<compile_context>
chip_gen: v7x
topology: tpu7x:2x2x1
jax: 0.10.0
libtpu: 0.0.40
codegen_flags: <defaults>
</compile_context>

<pallas_src>
import math
import jax
import jax.numpy as jnp
from jax.experimental import pallas as pl
from jax.experimental.pallas import tpu as pltpu

DIM = 128          # model dim (reference default 512; lane-dense demo size)
HEADS = 4
DH = DIM // HEADS
EPS = 1e-5
SCALE = 1.0 / math.sqrt(DH)


def _cls_attn_kernel(x_ref, gamma_ref, beta_ref, mask_ref,
                     wqkv_ref, bqkv_ref, wo_ref, bo_ref,
                     out_ref):
    """out = x[0] + W_o(MHSA_cls(LayerNorm(x)));  whole slab resident in VMEM."""
    x = x_ref[...]                                                           # (S, D) f32

    # ---- LayerNorm over the feature dim (f32 elementwise path) ----
    mu = jnp.mean(x, axis=-1, keepdims=True)
    var = jnp.mean((x - mu) * (x - mu), axis=-1, keepdims=True)
    xn = (x - mu) * jax.lax.rsqrt(var + EPS)
    xn = xn * gamma_ref[...] + beta_ref[...]
    xn_b = xn.astype(jnp.bfloat16)                                           # MXU operand

    # ---- single fused QKV projection (SCALE already folded into Wq/bq) ----
    qkv = jnp.dot(xn_b, wqkv_ref[...],
                  preferred_element_type=jnp.float32) + bqkv_ref[...]        # (S, 3D)
    q = qkv[0:1, 0:DIM]                                                      # (1, D), CLS row only
    k = qkv[:, DIM:2 * DIM]                                                  # (S, D) f32
    v = qkv[:, 2 * DIM:3 * DIM]                                              # (S, D) f32

    # ---- CLS-query attention, one lane-dense MXU pass over the head mask ----
    # s[j, d] = sum_{d' in head(d)} k[j, d'] * q[d']  (head score replicated
    # across the head's DH lanes).  mask_ref is the (D, D) block-diagonal 0/1
    # bf16 matrix; product terms are rounded to bf16 before the head-sum
    # (small precision delta vs. the standard bf16-q x bf16-k path).
    t = (k * q).astype(jnp.bfloat16)                                         # (S, D)
    s = jnp.dot(t, mask_ref[...], preferred_element_type=jnp.float32)        # (S, D)

    s = s - jnp.max(s, axis=0, keepdims=True)
    p = jnp.exp(s)
    p = p * pl.reciprocal(jnp.sum(p, axis=0, keepdims=True), approx=True)    # (S, D)

    attn = jnp.sum(p * v, axis=0, keepdims=True)                             # (1, D)

    # ---- output projection + residual (row 0 of the slab is the cls token) ----
    proj = jnp.dot(attn.astype(jnp.bfloat16), wo_ref[...],
                   preferred_element_type=jnp.float32) + bo_ref[...]         # (1, D)
    out_ref[...] = x_ref[0:1, :] + proj


def self_attention_forward(params, x_path, x_omic):
    """Reproduces SelfAttention.forward: returns (h[:, 0, :], None)."""
    cls = params["cls_token"][0]                              # (1, D)
    # Slab assembled in the wrapper so the kernel sees one aligned (S, D) input
    # (avoids sublane-misaligned in-kernel concat with a 1-row cls token).
    x = jnp.concatenate([cls, x_path[0], x_omic[0]], axis=0)  # (S, D) f32

    args = (x,
            params["gamma"], params["beta"], params["head_mask"],
            params["w_qkv"], params["b_qkv"],
            params["wo"], params["bo"])
    vmem = pl.BlockSpec(memory_space=pltpu.MemorySpace.VMEM)
    cls_out = pl.pallas_call(
        _cls_attn_kernel,
        out_shape=jax.ShapeDtypeStruct((1, DIM), jnp.float32),
        in_specs=[vmem] * len(args),
        out_specs=vmem,
    )(*args)
    return cls_out, None                                      # (1, D), None


def init_params(key, dim=DIM):
    ks = jax.random.split(key, 5)
    std = 1.0 / math.sqrt(dim)

    def lin_w(k, n_out):
        return jax.random.normal(k, (dim, n_out), jnp.float32) * std

    wq = lin_w(ks[1], dim) * SCALE                 # fold 1/sqrt(dh) into Wq
    wk = lin_w(ks[2], dim)
    wv = lin_w(ks[3], dim)
    w_qkv = jnp.concatenate([wq, wk, wv], axis=1).astype(jnp.bfloat16)   # (D, 3D)

    # Block-diagonal head mask: mask[d', d] = 1 iff d' and d are in the same head.
    head_of = jnp.arange(dim) // DH
    head_mask = (head_of[:, None] == head_of[None, :]).astype(jnp.bfloat16)  # (D, D)

    return {
        "cls_token": jax.random.normal(ks[0], (1, 1, dim), jnp.float32),
        "gamma": jnp.ones((1, dim), jnp.float32),
        "beta": jnp.zeros((1, dim), jnp.float32),
        "head_mask": head_mask,
        "w_qkv": w_qkv,
        "b_qkv": jnp.zeros((1, 3 * dim), jnp.float32),   # bq portion implicitly SCALE-folded (zeros)
        "wo": lin_w(ks[4], dim).astype(jnp.bfloat16),
        "bo": jnp.zeros((1, dim), jnp.float32),
    }


if __name__ == "__main__":
    key = jax.random.PRNGKey(0)
    kp, ko, kw = jax.random.split(key, 3)

    n_path, n_omic = 8, 8
    x_path = jax.random.normal(kp, (1, n_path, DIM), jnp.float32)
    x_omic = jax.random.normal(ko, (1, n_omic, DIM), jnp.float32)
    params = init_params(kw, DIM)

    cls_out, none_out = self_attention_forward(params, x_path, x_omic)
    cls_out = jax.block_until_ready(cls_out)

    assert cls_out.shape == (1, DIM)
    assert none_out is None
    assert bool(jnp.all(jnp.isfinite(cls_out)))
    print("KERNEL_OK")
</pallas_src>

<mosaic_0001>
module attributes {stable_mosaic.version = 11 : i64} {
  func.func @_cls_attn_kernel(%arg0: memref<17x128xf32, #tpu.memory_space<vmem>>, %arg1: memref<1x128xf32, #tpu.memory_space<vmem>>, %arg2: memref<1x128xf32, #tpu.memory_space<vmem>>, %arg3: memref<128x128xbf16, #tpu.memory_space<vmem>>, %arg4: memref<128x384xbf16, #tpu.memory_space<vmem>>, %arg5: memref<1x384xf32, #tpu.memory_space<vmem>>, %arg6: memref<128x128xbf16, #tpu.memory_space<vmem>>, %arg7: memref<1x128xf32, #tpu.memory_space<vmem>>, %arg8: memref<1x128xf32, #tpu.memory_space<vmem>>) attributes {dimension_semantics = [], scalar_prefetch = 0 : i64, scratch_operands = 0 : i64, tpu.core_type = #tpu.core_type<tc>} {
    %c0 = arith.constant 0 : index
    %c0_0 = arith.constant 0 : index
    %0 = vector.load %arg0[%c0, %c0_0] : memref<17x128xf32, #tpu.memory_space<vmem>>, vector<17x128xf32>
    %cst = arith.constant dense<0.000000e+00> : vector<17xf32>
    %1 = vector.multi_reduction <add>, %0, %cst [1] : vector<17x128xf32> to vector<17xf32>
    %2 = vector.shape_cast %1 : vector<17xf32> to vector<17x1xf32>
    %cst_1 = arith.constant 1.280000e+02 : f32
    %3 = vector.broadcast %cst_1 : f32 to vector<17x1xf32>
    %4 = arith.divf %2, %3 : vector<17x1xf32>
    %5 = vector.broadcast %4 : vector<17x1xf32> to vector<17x128xf32>
    %6 = arith.subf %0, %5 : vector<17x128xf32>
    %7 = vector.broadcast %4 : vector<17x1xf32> to vector<17x128xf32>
    %8 = arith.subf %0, %7 : vector<17x128xf32>
    %9 = arith.mulf %6, %8 : vector<17x128xf32>
    %cst_2 = arith.constant dense<0.000000e+00> : vector<17xf32>
    %10 = vector.multi_reduction <add>, %9, %cst_2 [1] : vector<17x128xf32> to vector<17xf32>
    %11 = vector.shape_cast %10 : vector<17xf32> to vector<17x1xf32>
    %cst_3 = arith.constant 1.280000e+02 : f32
    %12 = vector.broadcast %cst_3 : f32 to vector<17x1xf32>
    %13 = arith.divf %11, %12 : vector<17x1xf32>
    %14 = vector.broadcast %4 : vector<17x1xf32> to vector<17x128xf32>
    %15 = arith.subf %0, %14 : vector<17x128xf32>
    %cst_4 = arith.constant 9.99999974E-6 : f32
    %16 = vector.broadcast %cst_4 : f32 to vector<17x1xf32>
    %17 = arith.addf %13, %16 : vector<17x1xf32>
    %18 = math.rsqrt %17 : vector<17x1xf32>
    %19 = vector.broadcast %18 : vector<17x1xf32> to vector<17x128xf32>
    %20 = arith.mulf %15, %19 : vector<17x128xf32>
    %c0_5 = arith.constant 0 : index
    %c0_6 = arith.constant 0 : index
    %21 = vector.load %arg1[%c0_5, %c0_6] : memref<1x128xf32, #tpu.memory_space<vmem>>, vector<1x128xf32>
    %22 = vector.broadcast %21 : vector<1x128xf32> to vector<17x128xf32>
    %23 = arith.mulf %20, %22 : vector<17x128xf32>
    %c0_7 = arith.constant 0 : index
    %c0_8 = arith.constant 0 : index
    %24 = vector.load %arg2[%c0_7, %c0_8] : memref<1x128xf32, #tpu.memory_space<vmem>>, vector<1x128xf32>
    %25 = vector.broadcast %24 : vector<1x128xf32> to vector<17x128xf32>
    %26 = arith.addf %23, %25 : vector<17x128xf32>
    %27 = arith.truncf %26 : vector<17x128xf32> to vector<17x128xbf16>
    %c0_9 = arith.constant 0 : index
    %c0_10 = arith.constant 0 : index
    %28 = vector.load %arg4[%c0_9, %c0_10] : memref<128x384xbf16, #tpu.memory_space<vmem>>, vector<128x384xbf16>
    %cst_11 = arith.constant dense<0.000000e+00> : vector<17x384xf32>
    %29 = tpu.matmul %27, %28, %cst_11 {dimension_numbers = #tpu.dot_dimension_numbers<[1], [0], [0], [1], [0, 0, 1, 1], [], []>} : vector<17x128xbf16>, vector<128x384xbf16>, vector<17x384xf32> -> vector<17x384xf32>
    %c0_12 = arith.constant 0 : index
    %c0_13 = arith.constant 0 : index
    %30 = vector.load %arg5[%c0_12, %c0_13] : memref<1x384xf32, #tpu.memory_space<vmem>>, vector<1x384xf32>
    %31 = vector.broadcast %30 : vector<1x384xf32> to vector<17x384xf32>
    %32 = arith.addf %29, %31 : vector<17x384xf32>
    %33 = vector.extract_strided_slice %32 {offsets = [0, 0], sizes = [1, 128], strides = [1, 1]} : vector<17x384xf32> to vector<1x128xf32>
    %34 = vector.extract_strided_slice %32 {offsets = [0, 128], sizes = [17, 128], strides = [1, 1]} : vector<17x384xf32> to vector<17x128xf32>
    %35 = vector.extract_strided_slice %32 {offsets = [0, 256], sizes = [17, 128], strides = [1, 1]} : vector<17x384xf32> to vector<17x128xf32>
    %36 = vector.broadcast %33 : vector<1x128xf32> to vector<17x128xf32>
    %37 = arith.mulf %34, %36 : vector<17x128xf32>
    %38 = arith.truncf %37 : vector<17x128xf32> to vector<17x128xbf16>
    %c0_14 = arith.constant 0 : index
    %c0_15 = arith.constant 0 : index
    %39 = vector.load %arg3[%c0_14, %c0_15] : memref<128x128xbf16, #tpu.memory_space<vmem>>, vector<128x128xbf16>
    %cst_16 = arith.constant dense<0.000000e+00> : vector<17x128xf32>
    %40 = tpu.matmul %38, %39, %cst_16 {dimension_numbers = #tpu.dot_dimension_numbers<[1], [0], [0], [1], [0, 0, 1, 1], [], []>} : vector<17x128xbf16>, vector<128x128xbf16>, vector<17x128xf32> -> vector<17x128xf32>
    %cst_17 = arith.constant dense<0xFF800000> : vector<128xf32>
    %41 = vector.multi_reduction <maximumf>, %40, %cst_17 [0] : vector<17x128xf32> to vector<128xf32>
    %42 = vector.shape_cast %41 : vector<128xf32> to vector<1x128xf32>
    %43 = vector.broadcast %42 : vector<1x128xf32> to vector<17x128xf32>
    %44 = arith.subf %40, %43 : vector<17x128xf32>
    %45 = math.exp %44 : vector<17x128xf32>
    %cst_18 = arith.constant dense<0.000000e+00> : vector<128xf32>
    %46 = vector.multi_reduction <add>, %45, %cst_18 [0] : vector<17x128xf32> to vector<128xf32>
    %47 = vector.shape_cast %46 : vector<128xf32> to vector<1x128xf32>
    %48 = tpu.reciprocal %47 {approx = true} : vector<1x128xf32> -> vector<1x128xf32>
    %49 = vector.broadcast %48 : vector<1x128xf32> to vector<17x128xf32>
    %50 = arith.mulf %45, %49 : vector<17x128xf32>
    %51 = arith.mulf %50, %35 : vector<17x128xf32>
    %cst_19 = arith.constant dense<0.000000e+00> : vector<128xf32>
    %52 = vector.multi_reduction <add>, %51, %cst_19 [0] : vector<17x128xf32> to vector<128xf32>
    %53 = vector.shape_cast %52 : vector<128xf32> to vector<1x128xf32>
    %54 = arith.truncf %53 : vector<1x128xf32> to vector<1x128xbf16>
    %c0_20 = arith.constant 0 : index
    %c0_21 = arith.constant 0 : index
    %55 = vector.load %arg6[%c0_20, %c0_21] : memref<128x128xbf16, #tpu.memory_space<vmem>>, vector<128x128xbf16>
    %cst_22 = arith.constant dense<0.000000e+00> : vector<1x128xf32>
    %56 = tpu.matmul %54, %55, %cst_22 {dimension_numbers = #tpu.dot_dimension_numbers<[1], [0], [0], [1], [0, 0, 1, 1], [], []>} : vector<1x128xbf16>, vector<128x128xbf16>, vector<1x128xf32> -> vector<1x128xf32>
    %c0_23 = arith.constant 0 : index
    %c0_24 = arith.constant 0 : index
    %57 = vector.load %arg7[%c0_23, %c0_24] : memref<1x128xf32, #tpu.memory_space<vmem>>, vector<1x128xf32>
    %58 = arith.addf %56, %57 : vector<1x128xf32>
    %c0_25 = arith.constant 0 : index
    %c0_26 = arith.constant 0 : index
    %59 = vector.load %arg0[%c0_25, %c0_26] : memref<17x128xf32, #tpu.memory_space<vmem>>, vector<1x128xf32>
    %60 = arith.addf %59, %58 : vector<1x128xf32>
    %c0_27 = arith.constant 0 : index
    %c0_28 = arith.constant 0 : index
    %61 = vector.load %arg8[%c0_27, %c0_28] : memref<1x128xf32, #tpu.memory_space<vmem>>, vector<1x128xf32>
    tpu.vector_store %arg8[%c0_27, %c0_28], %60 {strides = array<i32>} : memref<1x128xf32, #tpu.memory_space<vmem>>, vector<1x128xf32>,
    return
  }
}

</mosaic_0001>

<llo_original>
// kernel: tpu_custom_call.1
$region0: #{tpu_custom_call.1}
  #allocation0 [shape = 'u32[]', space=smem, size = 0x4, offset = 0x4, fixed_abs, tag = 'smem constant byte address 0x4 - core index']
  #allocation1 [shape = 'u32[144,128]{1,0:T(1,128)}', space=vmem, size = 0x12000, scoped, tag = 'internal scratch']
  %s0 = inlined_call_operand.hbm [shape: f32[17,128], index: 0, kind: input, shape index: {}]
  %s1 = inlined_call_operand.vmem [shape: f32[1,128], index: 1, kind: input, shape index: {}]
  %s2 = inlined_call_operand.vmem [shape: f32[1,128], index: 2, kind: input, shape index: {}]
  %s3 = inlined_call_operand.hbm [shape: bf16[128,128], index: 3, kind: input, shape index: {}]
  %s4 = inlined_call_operand.hbm [shape: bf16[128,384], index: 4, kind: input, shape index: {}]
  %s5 = inlined_call_operand.vmem [shape: f32[1,384], index: 5, kind: input, shape index: {}]
  %s6 = inlined_call_operand.hbm [shape: bf16[128,128], index: 6, kind: input, shape index: {}]
  %s7 = inlined_call_operand.vmem [shape: f32[1,128], index: 7, kind: input, shape index: {}]
  %s8 = inlined_call_operand.hbm [shape: f32[1,128], index: 8, kind: output, shape index: {}]
  %s9 = sld [smem:[#allocation0]]
  $region58: #{tpu_custom_call.1} parent=0
    _
  %s11 = ssub.s32 1, %s9
  %s12 = scalar_select 0, %s11, %s9
  $region1: #{tpu_custom_call.1} parent=0
    #allocation2 [shape = 'u8[12288]{0}', space=vmem, size = 0x3000, scoped, tag = 'input window, operand 0, single buffered']
    #allocation3 [shape = 's32[1]{0}', space=sflag, size = 0x4, scoped, tag = 'scoped memory for tpu_custom_call.1']
    #allocation4 [shape = 's32[1]{0}', space=sflag, size = 0x4, scoped, tag = 'scoped memory for tpu_custom_call.1']
    #allocation5 [shape = 'u8[32768]{0}', space=vmem, size = 0x8000, scoped, tag = 'input window, operand 3, single buffered']
    #allocation6 [shape = 's32[1]{0}', space=sflag, size = 0x4, scoped, tag = 'scoped memory for tpu_custom_call.1']
    #allocation7 [shape = 'u8[98304]{0}', space=vmem, size = 0x18000, scoped, tag = 'input window, operand 4, single buffered']
    #allocation8 [shape = 'u8[32768]{0}', space=vmem, size = 0x8000, scoped, tag = 'input window, operand 6, single buffered']
    #allocation9 [shape = 's32[1]{0}', space=sflag, size = 0x4, scoped, tag = 'scoped memory for tpu_custom_call.1']
    #allocation10 [shape = 'u8[512]{0}', space=vmem, size = 0x400, scoped, tag = 'output window, operand 0, single buffered']
    %13 = vsyncpa [#allocation3], 0
    %14 = vsyncpa [#allocation6], 0
    %15 = vsyncpa [#allocation9], 0
    %16 = vsyncpa [#allocation4], 0
    // Predicated region
    $region2: #{tpu_custom_call.1} parent=1 // pred_check
      _
    $region3: #{tpu_custom_call.1} parent=1 // pred_check_branch
      %18 = sbr.rel (0) target = $region5
    $region4: #{tpu_custom_call.1} parent=1 // pred_region
      %s20 = ssub.s32 384, 384
      %21 = vsyncadd [#allocation3], %s20
      %s22 = sshll.u32 [#allocation2], 4
      %s23 = int_to_ptr.vmem [resolvable:$true] %s22
      %28 = dma.hbm_to_vmem [thread:$0]  %s0, 384, %s23, [#allocation3], 128, 128, 8
    $region5: #{tpu_custom_call.1} parent=1 // pred_fallthru
      _
    // Predicated region
    $region6: #{tpu_custom_call.1} parent=1 // pred_check
      _
    $region7: #{tpu_custom_call.1} parent=1 // pred_check_branch
      %30 = sbr.rel (0) target = $region9
    $region8: #{tpu_custom_call.1} parent=1 // pred_region
      _
    $region9: #{tpu_custom_call.1} parent=1 // pred_fallthru
      _
    // Predicated region
    $region10: #{tpu_custom_call.1} parent=1 // pred_check
      _
    $region11: #{tpu_custom_call.1} parent=1 // pred_check_branch
      %32 = sbr.rel (0) target = $region13
    $region12: #{tpu_custom_call.1} parent=1 // pred_region
      _
    $region13: #{tpu_custom_call.1} parent=1 // pred_fallthru
      _
    // Predicated region
    $region14: #{tpu_custom_call.1} parent=1 // pred_check
      _
    $region15: #{tpu_custom_call.1} parent=1 // pred_check_branch
      %34 = sbr.rel (0) target = $region17
    $region16: #{tpu_custom_call.1} parent=1 // pred_region
      %s36 = ssub.s32 1024, 1024
      %37 = vsyncadd [#allocation6], %s36
      %s38 = sshll.u32 [#allocation5], 4
      %s39 = int_to_ptr.vmem [resolvable:$true] %s38
      %44 = dma.hbm_to_vmem [thread:$0]  %s3, 1024, %s39, [#allocation6], 64, 64, 4
    $region17: #{tpu_custom_call.1} parent=1 // pred_fallthru
      _
    // Predicated region
    $region18: #{tpu_custom_call.1} parent=1 // pred_check
      _
    $region19: #{tpu_custom_call.1} parent=1 // pred_check_branch
      %46 = sbr.rel (0) target = $region21
    $region20: #{tpu_custom_call.1} parent=1 // pred_region
      %s48 = ssub.s32 3072, 3072
      %49 = vsyncadd [#allocation6], %s48
      %s50 = sshll.u32 [#allocation7], 4
      %s51 = int_to_ptr.vmem [resolvable:$true] %s50
      %56 = dma.hbm_to_vmem [thread:$0]  %s4, 3072, %s51, [#allocation6], 192, 192, 12
    $region21: #{tpu_custom_call.1} parent=1 // pred_fallthru
      _
    // Predicated region
    $region22: #{tpu_custom_call.1} parent=1 // pred_check
      _
    $region23: #{tpu_custom_call.1} parent=1 // pred_check_branch
      %58 = sbr.rel (0) target = $region25
    $region24: #{tpu_custom_call.1} parent=1 // pred_region
      _
    $region25: #{tpu_custom_call.1} parent=1 // pred_fallthru
      _
    // Predicated region
    $region26: #{tpu_custom_call.1} parent=1 // pred_check
      _
    $region27: #{tpu_custom_call.1} parent=1 // pred_check_branch
      %60 = sbr.rel (0) target = $region29
    $region28: #{tpu_custom_call.1} parent=1 // pred_region
      %s62 = ssub.s32 1024, 1024
      %63 = vsyncadd [#allocation9], %s62
      %s64 = sshll.u32 [#allocation8], 4
      %s65 = int_to_ptr.vmem [resolvable:$true] %s64
      %70 = dma.hbm_to_vmem [thread:$0]  %s6, 1024, %s65, [#allocation9], 64, 64, 4
    $region29: #{tpu_custom_call.1} parent=1 // pred_fallthru
      _
    // Predicated region
    $region30: #{tpu_custom_call.1} parent=1 // pred_check
      _
    $region31: #{tpu_custom_call.1} parent=1 // pred_check_branch
      %72 = sbr.rel (0) target = $region33
    $region32: #{tpu_custom_call.1} parent=1 // pred_region
      _
    $region33: #{tpu_custom_call.1} parent=1 // pred_fallthru
      _
    // Predicated region
    $region34: #{tpu_custom_call.1} parent=1 // pred_check
      _
    $region35: #{tpu_custom_call.1} parent=1 // pred_check_branch
      %74 = sbr.rel (0) target = $region37
    $region36: #{tpu_custom_call.1} parent=1 // pred_region
      %75 = dma.done [#allocation3], 384
    $region37: #{tpu_custom_call.1} parent=1 // pred_fallthru
      _
    // Predicated region
    $region38: #{tpu_custom_call.1} parent=1 // pred_check
      _
    $region39: #{tpu_custom_call.1} parent=1 // pred_check_branch
      %77 = sbr.rel (0) target = $region41
    $region40: #{tpu_custom_call.1} parent=1 // pred_region
      %78 = dma.done [#allocation6], 1024
    $region41: #{tpu_custom_call.1} parent=1 // pred_fallthru
      _
    // Predicated region
    $region42: #{tpu_custom_call.1} parent=1 // pred_check
      _
    $region43: #{tpu_custom_call.1} parent=1 // pred_check_branch
      %80 = sbr.rel (0) target = $region45
    $region44: #{tpu_custom_call.1} parent=1 // pred_region
      %81 = dma.done [#allocation6], 3072
    $region45: #{tpu_custom_call.1} parent=1 // pred_fallthru
      _
    // Predicated region
    $region46: #{tpu_custom_call.1} parent=1 // pred_check
      _
    $region47: #{tpu_custom_call.1} parent=1 // pred_check_branch
      %83 = sbr.rel (0) target = $region49
    $region48: #{tpu_custom_call.1} parent=1 // pred_region
      %84 = dma.done [#allocation9], 1024
    $region49: #{tpu_custom_call.1} parent=1 // pred_fallthru
      _
    %v86 = vld [vmem:[#allocation2] sm:$0xff]
    %v87 = vld [vmem:[#allocation2 + $0x8] sm:$0xff]
    %v88 = vld [vmem:[#allocation2 + $0x10] sm:$0x1]
    %89 = vadd.xlane.f32.xlu0 %v86
    %v90 = vpop.xlane.xlu0 %89
    %91 = vadd.xlane.f32.xlu0 %v87
    %v92 = vpop.xlane.xlu0 %91
    %vm93 = vcmask 1040384
    %v94 = vsel %vm93, %v88, 0.0
    %95 = vadd.xlane.f32.xlu0 %v94
    %v96 = vpop.xlane.xlu0 %95
    %v97 = vrcp.pop 128.0
    %v98 = vmul.f32 %v90, %v97
    %v99 = vmul.f32 %v92, %v97
    %v100 = vmul.f32 %v96, %v97
    %v101 = vsub.f32 %v86, %v98
    %v102 = vsub.f32 %v87, %v99
    %v103 = vsub.f32 %v88, %v100
    %v104 = vmul.f32 %v101, %v101
    %v105 = vmul.f32 %v102, %v102
    %v106 = vmul.f32 %v103, %v103
    %107 = vadd.xlane.f32.xlu0 %v104
    %v108 = vpop.xlane.xlu0 %107
    %109 = vadd.xlane.f32.xlu0 %v105
    %v110 = vpop.xlane.xlu0 %109
    %v111 = vsel %vm93, %v106, 0.0
    %112 = vadd.xlane.f32.xlu0 %v111
    %v113 = vpop.xlane.xlu0 %112
    %v114 = vmul.f32 %v108, %v97
    %v115 = vmul.f32 %v110, %v97
    %v116 = vmul.f32 %v113, %v97
    %v117 = vadd.f32 %v114, 1e-05
    %v118 = vadd.f32 %v115, 1e-05
    %v119 = vadd.f32 %v116, 1e-05
    %v120 = vrsqrt.pop %v117
    %v121 = vrsqrt.pop %v118
    %v122 = vrsqrt.pop %v119
    %v123 = vmul.f32 %v101, %v120
    %v124 = vmul.f32 %v102, %v121
    %v125 = vmul.f32 %v103, %v122
    %v126 = vld [vmem:[%s1] sm:$0x1]
    %v128 = vlaneseq
    %v129 = vshrl.u32 %v128, 7
    %v130 = vsub.s32 0, %v129
    %v131 = vrot.slane %v126, %v130
    %v133 = vmul.f32 %v123, %v131
    %v134 = vmul.f32 %v124, %v131
    %v135 = vmul.f32 %v125, %v131
    %v136 = vld [vmem:[%s2] sm:$0x1]
    %v138 = vlaneseq
    %v139 = vshrl.u32 %v138, 7
    %v140 = vsub.s32 0, %v139
    %v141 = vrot.slane %v136, %v140
    %v143 = vadd.f32 %v133, %v141
    %v144 = vadd.f32 %v134, %v141
    %v145 = vadd.f32 %v135, %v141
    %v146 = vpack.c.bf16 %v144, %v143
    %v147 = vpack.c.bf16 %v145, %v145
    %v148 = vld [vmem:[#allocation7] sm:$0xff]
    %v149 = vld [vmem:[#allocation7 + $0x8] sm:$0xf]
    %v150 = vld [vmem:[#allocation7 + $0xc] sm:$0xff]
    %v151 = vld [vmem:[#allocation7 + $0x14] sm:$0xf]
    %v152 = vld [vmem:[#allocation7 + $0x18] sm:$0xff]
    %v153 = vld [vmem:[#allocation7 + $0x20] sm:$0xf]
    %v154 = vld [vmem:[#allocation7 + $0x24] sm:$0xff]
    %v155 = vld [vmem:[#allocation7 + $0x2c] sm:$0xf]
    %v156 = vld [vmem:[#allocation7 + $0x30] sm:$0xff]
    %v157 = vld [vmem:[#allocation7 + $0x38] sm:$0xf]
    %v158 = vld [vmem:[#allocation7 + $0x3c] sm:$0xff]
    %v159 = vld [vmem:[#allocation7 + $0x44] sm:$0xf]
    %v160 = vld [vmem:[#allocation7 + $0x48] sm:$0xff]
    %v161 = vld [vmem:[#allocation7 + $0x50] sm:$0xf]
    %v162 = vld [vmem:[#allocation7 + $0x54] sm:$0xff]
    %v163 = vld [vmem:[#allocation7 + $0x5c] sm:$0xf]
    %v164 = vld [vmem:[#allocation7 + $0x60] sm:$0xff]
    %v165 = vld [vmem:[#allocation7 + $0x68] sm:$0xf]
    %v166 = vld [vmem:[#allocation7 + $0x6c] sm:$0xff]
    %v167 = vld [vmem:[#allocation7 + $0x74] sm:$0xf]
    %v168 = vld [vmem:[#allocation7 + $0x78] sm:$0xff]
    %v169 = vld [vmem:[#allocation7 + $0x80] sm:$0xf]
    %v170 = vld [vmem:[#allocation7 + $0x84] sm:$0xff]
    %v171 = vld [vmem:[#allocation7 + $0x8c] sm:$0xf]
    %v172 = vld [vmem:[#allocation7 + $0x90] sm:$0xff]
    %v173 = vld [vmem:[#allocation7 + $0x98] sm:$0xf]
    %v174 = vld [vmem:[#allocation7 + $0x9c] sm:$0xff]
    %v175 = vld [vmem:[#allocation7 + $0xa4] sm:$0xf]
    %v176 = vld [vmem:[#allocation7 + $0xa8] sm:$0xff]
    %v177 = vld [vmem:[#allocation7 + $0xb0] sm:$0xf]
    %v178 = vld [vmem:[#allocation7 + $0xb4] sm:$0xff]
    %v179 = vld [vmem:[#allocation7 + $0xbc] sm:$0xf]
    %v180 = vld [vmem:[%s5] sm:$0x7]
    %v182 = vlaneseq
    %v183 = vshrl.u32 %v182, 7
    %v184 = vsub.s32 0, %v183
    %v185 = vrot.slane %v180, %v184
    %v186 = vlaneseq
    %v187 = vshrl.u32 %v186, 7
    %v188 = vsub.s32 1, %v187
    %v189 = vrot.slane %v180, %v188
    %v190 = vlaneseq
    %v191 = vshrl.u32 %v190, 7
    %v192 = vsub.s32 2, %v191
    %v193 = vrot.slane %v180, %v192
    %v229 = vunpack.c.l.b16 %v148
    %v230 = vunpack.c.h.b16 %v148
    %v231 = vunpack.c.l.b16 %v149
    %v232 = vunpack.c.l.b16 %v150
    %v233 = vunpack.c.h.b16 %v150
    %v234 = vunpack.c.l.b16 %v151
    %v235 = vunpack.c.l.b16 %v152
    %v236 = vunpack.c.h.b16 %v152
    %v237 = vunpack.c.l.b16 %v153
    %v238 = vunpack.c.l.b16 %v154
    %v239 = vunpack.c.h.b16 %v154
    %v240 = vunpack.c.l.b16 %v155
    %v241 = vunpack.c.l.b16 %v156
    %v242 = vunpack.c.h.b16 %v156
    %v243 = vunpack.c.l.b16 %v157
    %v244 = vunpack.c.l.b16 %v158
    %v245 = vunpack.c.h.b16 %v158
    %v246 = vunpack.c.l.b16 %v159
    %v247 = vunpack.c.l.b16 %v160
    %v248 = vunpack.c.h.b16 %v160
    %v249 = vunpack.c.l.b16 %v161
    %v250 = vunpack.c.l.b16 %v162
    %v251 = vunpack.c.h.b16 %v162
    %v252 = vunpack.c.l.b16 %v163
    %v253 = vunpack.c.l.b16 %v164
    %v254 = vunpack.c.h.b16 %v164
    %v255 = vunpack.c.l.b16 %v165
    %v256 = vunpack.c.l.b16 %v166
    %v257 = vunpack.c.h.b16 %v166
    %v258 = vunpack.c.l.b16 %v167
    %v259 = vunpack.c.l.b16 %v168
    %v260 = vunpack.c.h.b16 %v168
    %v261 = vunpack.c.l.b16 %v169
    %v262 = vunpack.c.l.b16 %v170
    %v263 = vunpack.c.h.b16 %v170
    %v264 = vunpack.c.l.b16 %v171
    %v265 = vunpack.c.l.b16 %v172
    %v266 = vunpack.c.h.b16 %v172
    %v267 = vunpack.c.l.b16 %v173
    %v268 = vunpack.c.l.b16 %v174
    %v269 = vunpack.c.h.b16 %v174
    %v270 = vunpack.c.l.b16 %v175
    %v271 = vunpack.c.l.b16 %v176
    %v272 = vunpack.c.h.b16 %v176
    %v273 = vunpack.c.l.b16 %v177
    %v274 = vunpack.c.l.b16 %v178
    %v275 = vunpack.c.h.b16 %v178
    %v276 = vunpack.c.l.b16 %v179
    %v277 = vpack.c.b16 %v232, %v229
    %v278 = vpack.c.b16 %v233, %v230
    %v279 = vpack.c.b16 %v234, %v231
    %v280 = vpack.c.b16 %v238, %v235
    %v281 = vpack.c.b16 %v239, %v236
    %v282 = vpack.c.b16 %v240, %v237
    %v283 = vpack.c.b16 %v244, %v241
    %v284 = vpack.c.b16 %v245, %v242
    %v285 = vpack.c.b16 %v246, %v243
    %v286 = vpack.c.b16 %v250, %v247
    %v287 = vpack.c.b16 %v251, %v248
    %v288 = vpack.c.b16 %v252, %v249
    %v289 = vpack.c.b16 %v256, %v253
    %v290 = vpack.c.b16 %v257, %v254
    %v291 = vpack.c.b16 %v258, %v255
    %v292 = vpack.c.b16 %v262, %v259
    %v293 = vpack.c.b16 %v263, %v260
    %v294 = vpack.c.b16 %v264, %v261
    %v295 = vpack.c.b16 %v268, %v265
    %v296 = vpack.c.b16 %v269, %v266
    %v297 = vpack.c.b16 %v270, %v267
    %v298 = vpack.c.b16 %v274, %v271
    %v299 = vpack.c.b16 %v275, %v272
    %v300 = vpack.c.b16 %v276, %v273
    %325 = vmatprep.subr.bf16.mxu0 %v278
    %326 = vmatpush1.bf16.msra.mxu0 %v277
    %327 = vmatprep.subr.bf16.mxu0 %v281
    %328 = vmatpush1.bf16.msra.mxu0 %v280
    %329 = vmatprep.subr.bf16.mxu0 %v284
    %330 = vmatpush1.bf16.msra.mxu0 %v283
    %331 = vmatprep.subr.bf16.mxu0 %v287
    %332 = vmatpush1.bf16.msra.mxu0 %v286
    %333 = vmatprep.subr.bf16.mxu0 %v290
    %334 = vmatpush1.bf16.msra.mxu0 %v289
    %335 = vmatprep.subr.bf16.mxu0 %v293
    %336 = vmatpush1.bf16.msra.mxu0 %v292
    %337 = vmatprep.subr.bf16.mxu0 %v296
    %338 = vmatpush1.bf16.msra.mxu0 %v295
    %339 = vmatprep.subr.bf16.mxu0 %v299
    %340 = vmatpush1.bf16.msra.mxu0 %v298
    %341 = vmatprep.subr.bf16.mxu0 0
    %342 = vmatpush1.bf16.msra.mxu0 0
    %343 = vmatprep.subr.bf16.mxu0 0
    %344 = vmatpush1.bf16.msra.mxu0 0
    %345 = vmatprep.subr.bf16.mxu0 0
    %346 = vmatpush1.bf16.msra.mxu0 0
    %347 = vmatprep.subr.bf16.mxu0 0
    %348 = vmatpush1.bf16.msra.mxu0 0
    %349 = vmatprep.subr.bf16.mxu0 0
    %350 = vmatpush1.bf16.msra.mxu0 0
    %351 = vmatprep.subr.bf16.mxu0 0
    %352 = vmatpush1.bf16.msra.mxu0 0
    %353 = vmatprep.subr.bf16.mxu0 0
    %354 = vmatpush1.bf16.msra.mxu0 0
    %355 = vmatprep.subr.bf16.mxu0 0
    %356 = vmatpush1.bf16.msra.mxu0 0
    %357 = vmatprep.mubr.bf16.mxu0 0
    %358 = vmatmul.mubr.bf16.gmra.mrb[0].mxu0 %v146
    %v359 = vpop.f32.mrb[0].mxu0
    %v360 = vadd.f32 %v185, %v359
    %v361 = vpop.f32.mrb[0].mxu0
    %v362 = vadd.f32 %v189, %v361
    %v363 = vpop.f32.mrb[0].mxu0
    %v364 = vpop.f32.mrb[0].mxu0
    %v365 = vadd.f32 %v189, %v364
    %366 = vmatprep.mubr.bf16.mxu0 0
    %367 = vmatmul.mubr.bf16.gmra.mrb[0].mxu0 %v147
    %v368 = vpop.f32.mrb[0].mxu0
    %v369 = vpop.f32.mrb[0].mxu0
    %v370 = vadd.f32 %v189, %v369
    %v371 = vpop.f32.mrb[0].mxu0
    %v372 = vpop.f32.mrb[0].mxu0
    %373 = vdwg.mxu0
    %374 = vmatprep.subr.bf16.mxu0 0
    %375 = vmatpush1.bf16.msra.mxu0 %v279
    %376 = vmatprep.subr.bf16.mxu0 0
    %377 = vmatpush1.bf16.msra.mxu0 %v282
    %378 = vmatprep.subr.bf16.mxu0 0
    %379 = vmatpush1.bf16.msra.mxu0 %v285
    %380 = vmatprep.subr.bf16.mxu0 0
    %381 = vmatpush1.bf16.msra.mxu0 %v288
    %382 = vmatprep.subr.bf16.mxu0 0
    %383 = vmatpush1.bf16.msra.mxu0 %v291
    %384 = vmatprep.subr.bf16.mxu0 0
    %385 = vmatpush1.bf16.msra.mxu0 %v294
    %386 = vmatprep.subr.bf16.mxu0 0
    %387 = vmatpush1.bf16.msra.mxu0 %v297
    %388 = vmatprep.subr.bf16.mxu0 0
    %389 = vmatpush1.bf16.msra.mxu0 %v300
    %390 = vmatprep.subr.bf16.mxu0 0
    %391 = vmatpush1.bf16.msra.mxu0 0
    %392 = vmatprep.subr.bf16.mxu0 0
    %393 = vmatpush1.bf16.msra.mxu0 0
    %394 = vmatprep.subr.bf16.mxu0 0
    %395 = vmatpush1.bf16.msra.mxu0 0
    %396 = vmatprep.subr.bf16.mxu0 0
    %397 = vmatpush1.bf16.msra.mxu0 0
    %398 = vmatprep.subr.bf16.mxu0 0
    %399 = vmatpush1.bf16.msra.mxu0 0
    %400 = vmatprep.subr.bf16.mxu0 0
    %401 = vmatpush1.bf16.msra.mxu0 0
    %402 = vmatprep.subr.bf16.mxu0 0
    %403 = vmatpush1.bf16.msra.mxu0 0
    %404 = vmatprep.subr.bf16.mxu0 0
    %405 = vmatpush1.bf16.msra.mxu0 0
    %406 = vmatprep.mubr.bf16.mxu0 0
    %407 = vmatmul.mubr.bf16.gmra.mrb[0].mxu0 %v146
    %v408 = vpop.f32.mrb[0].mxu0
    %v409 = vadd.f32 %v193, %v408
    %v410 = vpop.f32.mrb[0].mxu0
    %v411 = vpop.f32.mrb[0].mxu0
    %v412 = vadd.f32 %v193, %v411
    %v413 = vpop.f32.mrb[0].mxu0
    %414 = vmatprep.mubr.bf16.mxu0 0
    %415 = vmatmul.mubr.bf16.gmra.mrb[0].mxu0 %v147
    %v416 = vpop.f32.mrb[0].mxu0
    %v417 = vadd.f32 %v193, %v416
    %v418 = vpop.f32.mrb[0].mxu0
    %v419 = vpop.f32.mrb[0].mxu0
    %v420 = vpop.f32.mrb[0].mxu0
    %421 = vdwg.mxu0
    %v422 = vlaneseq
    %v423 = vshrl.u32 %v422, 7
    %v424 = vsub.s32 0, %v423
    %v425 = vrot.slane %v360, %v424
    %v426 = vmul.f32 %v362, %v425
    %v427 = vmul.f32 %v365, %v425
    %v428 = vmul.f32 %v370, %v425
    %v429 = vpack.c.bf16 %v427, %v426
    %v430 = vpack.c.bf16 %v428, %v428
    %v431 = vld [vmem:[#allocation5] sm:$0xf]
    %v432 = vld [vmem:[#allocation5 + $0x4] sm:$0xf]
    %v433 = vld [vmem:[#allocation5 + $0x8] sm:$0xf]
    %v434 = vld [vmem:[#allocation5 + $0xc] sm:$0xf]
    %v435 = vld [vmem:[#allocation5 + $0x10] sm:$0xf]
    %v436 = vld [vmem:[#allocation5 + $0x14] sm:$0xf]
    %v437 = vld [vmem:[#allocation5 + $0x18] sm:$0xf]
    %v438 = vld [vmem:[#allocation5 + $0x1c] sm:$0xf]
    %v439 = vld [vmem:[#allocation5 + $0x20] sm:$0xf]
    %v440 = vld [vmem:[#allocation5 + $0x24] sm:$0xf]
    %v441 = vld [vmem:[#allocation5 + $0x28] sm:$0xf]
    %v442 = vld [vmem:[#allocation5 + $0x2c] sm:$0xf]
    %v443 = vld [vmem:[#allocation5 + $0x30] sm:$0xf]
    %v444 = vld [vmem:[#allocation5 + $0x34] sm:$0xf]
    %v445 = vld [vmem:[#allocation5 + $0x38] sm:$0xf]
    %v446 = vld [vmem:[#allocation5 + $0x3c] sm:$0xf]
    %v463 = vunpack.c.l.b16 %v431
    %v464 = vunpack.c.l.b16 %v432
    %v465 = vunpack.c.l.b16 %v433
    %v466 = vunpack.c.l.b16 %v434
    %v467 = vunpack.c.l.b16 %v435
    %v468 = vunpack.c.l.b16 %v436
    %v469 = vunpack.c.l.b16 %v437
    %v470 = vunpack.c.l.b16 %v438
    %v471 = vunpack.c.l.b16 %v439
    %v472 = vunpack.c.l.b16 %v440
    %v473 = vunpack.c.l.b16 %v441
    %v474 = vunpack.c.l.b16 %v442
    %v475 = vunpack.c.l.b16 %v443
    %v476 = vunpack.c.l.b16 %v444
    %v477 = vunpack.c.l.b16 %v445
    %v478 = vunpack.c.l.b16 %v446
    %v479 = vpack.c.b16 %v464, %v463
    %v480 = vpack.c.b16 %v466, %v465
    %v481 = vpack.c.b16 %v468, %v467
    %v482 = vpack.c.b16 %v470, %v469
    %v483 = vpack.c.b16 %v472, %v471
    %v484 = vpack.c.b16 %v474, %v473
    %v485 = vpack.c.b16 %v476, %v475
    %v486 = vpack.c.b16 %v478, %v477
    %495 = vmatprep.subr.bf16.mxu0 0
    %496 = vmatpush1.bf16.msra.mxu0 %v479
    %497 = vmatprep.subr.bf16.mxu0 0
    %498 = vmatpush1.bf16.msra.mxu0 %v480
    %499 = vmatprep.subr.bf16.mxu0 0
    %500 = vmatpush1.bf16.msra.mxu0 %v481
    %501 = vmatprep.subr.bf16.mxu0 0
    %502 = vmatpush1.bf16.msra.mxu0 %v482
    %503 = vmatprep.subr.bf16.mxu0 0
    %504 = vmatpush1.bf16.msra.mxu0 %v483
    %505 = vmatprep.subr.bf16.mxu0 0
    %506 = vmatpush1.bf16.msra.mxu0 %v484
    %507 = vmatprep.subr.bf16.mxu0 0
    %508 = vmatpush1.bf16.msra.mxu0 %v485
    %509 = vmatprep.subr.bf16.mxu0 0
    %510 = vmatpush1.bf16.msra.mxu0 %v486
    %511 = vmatprep.subr.bf16.mxu0 0
    %512 = vmatpush1.bf16.msra.mxu0 0
    %513 = vmatprep.subr.bf16.mxu0 0
    %514 = vmatpush1.bf16.msra.mxu0 0
    %515 = vmatprep.subr.bf16.mxu0 0
    %516 = vmatpush1.bf16.msra.mxu0 0
    %517 = vmatprep.subr.bf16.mxu0 0
    %518 = vmatpush1.bf16.msra.mxu0 0
    %519 = vmatprep.subr.bf16.mxu0 0
    %520 = vmatpush1.bf16.msra.mxu0 0
    %521 = vmatprep.subr.bf16.mxu0 0
    %522 = vmatpush1.bf16.msra.mxu0 0
    %523 = vmatprep.subr.bf16.mxu0 0
    %524 = vmatpush1.bf16.msra.mxu0 0
    %525 = vmatprep.subr.bf16.mxu0 0
    %526 = vmatpush1.bf16.msra.mxu0 0
    %527 = vmatprep.mubr.bf16.mxu0 0
    %528 = vmatmul.mubr.bf16.gmra.mrb[0].mxu0 %v429
    %v529 = vpop.f32.mrb[0].mxu0
    %v530 = vadd.f32 0.0, %v529
    %v531 = vpop.f32.mrb[0].mxu0
    %v532 = vpop.f32.mrb[0].mxu0
    %v533 = vadd.f32 0.0, %v532
    %v534 = vpop.f32.mrb[0].mxu0
    %535 = vmatprep.mubr.bf16.mxu0 0
    %536 = vmatmul.mubr.bf16.gmra.mrb[0].mxu0 %v430
    %v537 = vpop.f32.mrb[0].mxu0
    %v538 = vadd.f32 0.0, %v537
    %v539 = vpop.f32.mrb[0].mxu0
    %v540 = vpop.f32.mrb[0].mxu0
    %v541 = vpop.f32.mrb[0].mxu0
    %542 = vdwg.mxu0
    %v543 = vsel %vm93, %v538, -inf
    %v544 = vmax.f32 %v530, %v533
    %v545 = vmax.f32 %v544, %v543
    %v546 = vrot.slane %v545, 4
    %v547 = vmax.f32 %v545, %v546
    %v548 = vrot.slane %v547, 2
    %v549 = vmax.f32 %v547, %v548
    %v550 = vrot.slane %v549, 1
    %v551 = vmax.f32 %v549, %v550
    %v552 = vsub.f32 %v530, %v551
    %v553 = vsub.f32 %v533, %v551
    %v554 = vsub.f32 %v538, %v551
    %v555 = vmul.f32 %v552, 1.442695
    %v556 = vpow.pop %v555
    %v557 = vmul.f32 %v553, 1.442695
    %v558 = vpow.pop %v557
    %v559 = vmul.f32 %v554, 1.442695
    %v560 = vpow.pop %v559
    %v561 = vadd.f32 %v556, %v558
    %v562 = vsel %vm93, %v560, 0.0
    %v563 = vadd.f32 %v561, %v562
    %v564 = vrot.slane %v563, 4
    %v565 = vadd.f32 %v563, %v564
    %v566 = vrot.slane %v565, 2
    %v567 = vadd.f32 %v565, %v566
    %v568 = vrot.slane %v567, 1
    %v569 = vadd.f32 %v567, %v568
    %v570 = vrcp.pop %v569
    %v571 = vmul.f32 %v556, %v570
    %v572 = vmul.f32 %v558, %v570
    %v573 = vmul.f32 %v560, %v570
    %v574 = vmul.f32 %v571, %v409
    %v575 = vmul.f32 %v572, %v412
    %v576 = vmul.f32 %v573, %v417
    %v577 = vadd.f32 %v574, %v575
    %v578 = vsel %vm93, %v576, 0.0
    %v579 = vadd.f32 %v577, %v578
    %v580 = vrot.slane %v579, 4
    %v581 = vadd.f32 %v579, %v580
    %v582 = vrot.slane %v581, 2
    %v583 = vadd.f32 %v581, %v582
    %v584 = vrot.slane %v583, 1
    %v585 = vadd.f32 %v583, %v584
    %v586 = vpack.c.bf16 %v585, %v585
    %v587 = vld [vmem:[#allocation8] sm:$0xf]
    %v588 = vld [vmem:[#allocation8 + $0x4] sm:$0xf]
    %v589 = vld [vmem:[#allocation8 + $0x8] sm:$0xf]
    %v590 = vld [vmem:[#allocation8 + $0xc] sm:$0xf]
    %v591 = vld [vmem:[#allocation8 + $0x10] sm:$0xf]
    %v592 = vld [vmem:[#allocation8 + $0x14] sm:$0xf]
    %v593 = vld [vmem:[#allocation8 + $0x18] sm:$0xf]
    %v594 = vld [vmem:[#allocation8 + $0x1c] sm:$0xf]
    %v595 = vld [vmem:[#allocation8 + $0x20] sm:$0xf]
    %v596 = vld [vmem:[#allocation8 + $0x24] sm:$0xf]
    %v597 = vld [vmem:[#allocation8 + $0x28] sm:$0xf]
    %v598 = vld [vmem:[#allocation8 + $0x2c] sm:$0xf]
    %v599 = vld [vmem:[#allocation8 + $0x30] sm:$0xf]
    %v600 = vld [vmem:[#allocation8 + $0x34] sm:$0xf]
    %v601 = vld [vmem:[#allocation8 + $0x38] sm:$0xf]
    %v602 = vld [vmem:[#allocation8 + $0x3c] sm:$0xf]
    %v603 = vld [vmem:[%s7] sm:$0x1]
    %v620 = vunpack.c.l.b16 %v587
    %v621 = vunpack.c.l.b16 %v588
    %v622 = vunpack.c.l.b16 %v589
    %v623 = vunpack.c.l.b16 %v590
    %v624 = vunpack.c.l.b16 %v591
    %v625 = vunpack.c.l.b16 %v592
    %v626 = vunpack.c.l.b16 %v593
    %v627 = vunpack.c.l.b16 %v594
    %v628 = vunpack.c.l.b16 %v595
    %v629 = vunpack.c.l.b16 %v596
    %v630 = vunpack.c.l.b16 %v597
    %v631 = vunpack.c.l.b16 %v598
    %v632 = vunpack.c.l.b16 %v599
    %v633 = vunpack.c.l.b16 %v600
    %v634 = vunpack.c.l.b16 %v601
    %v635 = vunpack.c.l.b16 %v602
    %v636 = vpack.c.b16 %v621, %v620
    %v637 = vpack.c.b16 %v623, %v622
    %v638 = vpack.c.b16 %v625, %v624
    %v639 = vpack.c.b16 %v627, %v626
    %v640 = vpack.c.b16 %v629, %v628
    %v641 = vpack.c.b16 %v631, %v630
    %v642 = vpack.c.b16 %v633, %v632
    %v643 = vpack.c.b16 %v635, %v634
    %652 = vmatprep.subr.bf16.mxu0 0
    %653 = vmatpush1.bf16.msra.mxu0 %v636
    %654 = vmatprep.subr.bf16.mxu0 0
    %655 = vmatpush1.bf16.msra.mxu0 %v637
    %656 = vmatprep.subr.bf16.mxu0 0
    %657 = vmatpush1.bf16.msra.mxu0 %v638
    %658 = vmatprep.subr.bf16.mxu0 0
    %659 = vmatpush1.bf16.msra.mxu0 %v639
    %660 = vmatprep.subr.bf16.mxu0 0
    %661 = vmatpush1.bf16.msra.mxu0 %v640
    %662 = vmatprep.subr.bf16.mxu0 0
    %663 = vmatpush1.bf16.msra.mxu0 %v641
    %664 = vmatprep.subr.bf16.mxu0 0
    %665 = vmatpush1.bf16.msra.mxu0 %v642
    %666 = vmatprep.subr.bf16.mxu0 0
    %667 = vmatpush1.bf16.msra.mxu0 %v643
    %668 = vmatprep.subr.bf16.mxu0 0
    %669 = vmatpush1.bf16.msra.mxu0 0
    %670 = vmatprep.subr.bf16.mxu0 0
    %671 = vmatpush1.bf16.msra.mxu0 0
    %672 = vmatprep.subr.bf16.mxu0 0
    %673 = vmatpush1.bf16.msra.mxu0 0
    %674 = vmatprep.subr.bf16.mxu0 0
    %675 = vmatpush1.bf16.msra.mxu0 0
    %676 = vmatprep.subr.bf16.mxu0 0
    %677 = vmatpush1.bf16.msra.mxu0 0
    %678 = vmatprep.subr.bf16.mxu0 0
    %679 = vmatpush1.bf16.msra.mxu0 0
    %680 = vmatprep.subr.bf16.mxu0 0
    %681 = vmatpush1.bf16.msra.mxu0 0
    %682 = vmatprep.subr.bf16.mxu0 0
    %683 = vmatpush1.bf16.msra.mxu0 0
    %684 = vmatprep.mubr.bf16.mxu0 0
    %685 = vmatmul.mubr.bf16.gmra.mrb[0].mxu0 %v586
    %v686 = vpop.f32.mrb[0].mxu0
    %v687 = vadd.f32 %v603, %v686
    %v688 = vpop.f32.mrb[0].mxu0
    %v689 = vpop.f32.mrb[0].mxu0
    %v690 = vpop.f32.mrb[0].mxu0
    %691 = vdwg.mxu0
    %v692 = vld [vmem:[#allocation2] sm:$0x1]
    %v693 = vadd.f32 %v692, %v687
    %694 = vst [vmem:[#allocation10] sm:$0x1] %v693
    // Predicated region
    $region50: #{tpu_custom_call.1} parent=1 // pred_check
      _
    $region51: #{tpu_custom_call.1} parent=1 // pred_check_branch
      %696 = sbr.rel (0) target = $region53
    $region52: #{tpu_custom_call.1} parent=1 // pred_region
      %s698 = ssub.s32 16, 16
      %699 = vsyncadd [#allocation4], %s698
      %s701 = sshll.u32 [#allocation10], 4
      %s702 = int_to_ptr.vmem [resolvable:$true] %s701
      %704 = dma.vmem_to_hbm [thread:$0]  %s702, 16, %s8, [#allocation4]
    $region53: #{tpu_custom_call.1} parent=1 // pred_fallthru
      _
    // Predicated region
    $region54: #{tpu_custom_call.1} parent=1 // pred_check
      _
    $region55: #{tpu_custom_call.1} parent=1 // pred_check_branch
      %706 = sbr.rel (0) target = $region57
    $region56: #{tpu_custom_call.1} parent=1 // pred_region
      %707 = dma.done [#allocation4], 16
    $region57: #{tpu_custom_call.1} parent=1 // pred_fallthru
      _
    %708 = vsyncpa [#allocation3], 1
    %709 = vsyncpa [#allocation6], 1
    %710 = vsyncpa [#allocation9], 1
    %711 = vsyncpa [#allocation4], 1

</llo_original>
